<compile_context>
chip_gen: v5e
topology: v5e:2x2
jax: 0.10.0
libtpu: 0.0.40
codegen_flags: <defaults>
</compile_context>

<pallas_src>
import jax
import jax.numpy as jnp
from jax.experimental import pallas as pl
from jax.experimental.pallas import tpu as pltpu


def _vmem_capacity_bytes():
    try:
        return int(pltpu.get_tpu_info().vmem_capacity_bytes)
    except Exception:
        return 64 << 20  # conservative default (v7x per-TensorCore VMEM)


def _choose_tiling(hw, n_batch, cin, cout, vmem_cap):
    """Return (padded subrow count, sublane-rows per block S)."""
    hw_p = -(-hw // 128) * 128
    subrows = hw_p // 128
    # Keep double-buffered input+output blocks under ~40% of VMEM.
    bytes_per_subrow = (cin + cout) * 128 * 4          # f32 in + out
    s_cap = max(8, int(vmem_cap * 0.4) // (2 * bytes_per_subrow))
    s_cap -= s_cap % 8
    s_cap = max(s_cap, 8)

    if subrows <= s_cap:
        s = subrows                                    # full extent: always legal
        # v7x has 2 TensorCores: keep >= 2 parallel grid steps when we can.
        if n_batch < 2 and subrows % 16 == 0:
            s = subrows // 2
    else:
        s = None
        for cand in range(s_cap, 7, -8):               # multiple-of-8 divisor
            if subrows % cand == 0:
                s = cand
                break
        if s is None:
            subrows = -(-subrows // 8) * 8             # pad to a multiple of 8 rows
            s = 8
            for cand in range(s_cap, 7, -8):
                if subrows % cand == 0:
                    s = cand
                    break
    return subrows, s


def conv1x1_relu(x4, w_flat, b_flat, s_tile, vmem_cap):
    """x4: (N, Cin, SUBROWS, 128) f32; w_flat: (Cout*Cin,); b_flat: (Cout,).

    Returns relu(W @ x + b) in the same (N, Cout, SUBROWS, 128) layout.
    """
    n, cin, subrows, lanes = x4.shape
    assert lanes == 128 and subrows % s_tile == 0
    cout = b_flat.shape[0]
    n_tiles = subrows // s_tile

    def kernel(x_ref, w_ref, b_ref, o_ref):
        # x_ref: (1, Cin, S, 128) VMEM; w_ref: (Cout*Cin,), b_ref: (Cout,) SMEM.
        for o in range(cout):                          # static unroll (Cout == 3)
            acc = x_ref[0, 0] * w_ref[o * cin + 0]     # scalar * dense (S,128)
            for c in range(1, cin):
                acc = acc + x_ref[0, c] * w_ref[o * cin + c]
            # store each channel as soon as it is ready: dense (S,128) vst
            o_ref[0, o] = jnp.maximum(acc + b_ref[o], 0.0)

    block_in = cin * s_tile * 128 * 4
    block_out = cout * s_tile * 128 * 4
    vmem_limit = 2 * (block_in + block_out) + (4 << 20)
    vmem_limit = int(max(16 << 20, min(vmem_limit, int(vmem_cap * 0.75))))

    hw_total = subrows * 128
    cost = pl.CostEstimate(
        flops=int(n * cout * hw_total * (2 * cin + 2)),
        transcendentals=0,
        bytes_accessed=int(4 * n * (cin + cout) * hw_total),
    )

    return pl.pallas_call(
        kernel,
        out_shape=jax.ShapeDtypeStruct((n, cout, subrows, 128), jnp.float32),
        grid_spec=pltpu.PrefetchScalarGridSpec(
            num_scalar_prefetch=0,
            grid=(n, n_tiles),
            in_specs=[
                pl.BlockSpec((1, cin, s_tile, 128), lambda b, t: (b, 0, t, 0)),
                pl.BlockSpec(memory_space=pltpu.MemorySpace.SMEM),
                pl.BlockSpec(memory_space=pltpu.MemorySpace.SMEM),
            ],
            out_specs=pl.BlockSpec((1, cout, s_tile, 128),
                                   lambda b, t: (b, 0, t, 0)),
        ),
        compiler_params=pltpu.CompilerParams(
            dimension_semantics=("parallel", "parallel"),
            vmem_limit_bytes=vmem_limit),
        cost_estimate=cost,
    )(x4, w_flat, b_flat)


@jax.jit
def model_forward(x_nchw, w_conv, b_conv):
    """Conv2d(3,3,1,stride=1,padding=1) -> ReLU -> Dropout2d (eval identity)."""
    n, cin, h, w = x_nchw.shape
    cout = w_conv.shape[0]
    hw = h * w
    vmem_cap = _vmem_capacity_bytes()

    subrows, s_tile = _choose_tiling(hw, n, cin, cout, vmem_cap)

    x3 = x_nchw.reshape(n, cin, hw)                    # contiguous collapse
    if subrows * 128 != hw:
        # TODO(synk): ragged spatial tail handled by a one-off pad; never hit
        # when H*W is already a multiple of 128 (e.g. 256x256 or 16x16 inputs).
        x3 = jnp.pad(x3, ((0, 0), (0, 0), (0, subrows * 128 - hw)))
    x4 = x3.reshape(n, cin, subrows, 128)              # (8,128)-dense vreg tiles

    w_flat = w_conv.reshape(cout * cin).astype(jnp.float32)
    b_flat = b_conv.reshape(cout).astype(jnp.float32)

    y4 = conv1x1_relu(x4, w_flat, b_flat, s_tile, vmem_cap)
    y = y4.reshape(n, cout, subrows * 128)[:, :, :hw].reshape(n, cout, h, w)

    # padding=1 with a 1x1 kernel: border pixels see only zeros -> relu(bias).
    # Single fused epilogue: zero-pad y and overwrite the 1-pixel ring in-place
    # (pad + iota + where fuse into one output write, no broadcast_to/.at pass).
    border = jnp.maximum(b_flat, 0.0).reshape(1, cout, 1, 1)
    row = jax.lax.broadcasted_iota(jnp.int32, (h + 2, w + 2), 0)
    col = jax.lax.broadcasted_iota(jnp.int32, (h + 2, w + 2), 1)
    is_border = (row == 0) | (row == h + 1) | (col == 0) | (col == w + 1)
    out = jnp.pad(y, ((0, 0), (0, 0), (1, 1), (1, 1)))
    out = jnp.where(is_border[None, None], border, out)
    # TODO(synk): Dropout2d(p=0.1) training-mode channel masking not implemented
    # (inference/eval-mode identity reproduced here).
    return out


if __name__ == "__main__":
    key = jax.random.PRNGKey(0)
    k_x, k_w, k_b = jax.random.split(key, 3)

    # Small shapes consistent with the module: channels fixed at 3 by Conv2d(3,3,1).
    n, c, h, w = 2, 3, 16, 16
    x = jax.random.normal(k_x, (n, c, h, w), dtype=jnp.float32)
    w_conv = jax.random.normal(k_w, (3, 3, 1, 1), dtype=jnp.float32) * 0.1
    b_conv = jax.random.normal(k_b, (3,), dtype=jnp.float32) * 0.1

    out = model_forward(x, w_conv, b_conv)
    out = jax.block_until_ready(out)

    # Reference: pointwise conv on the zero-padded input + bias + relu.
    xp = jnp.pad(x, ((0, 0), (0, 0), (1, 1), (1, 1)))
    ref = jnp.einsum('oc,nchw->nohw', w_conv.reshape(3, 3), xp)
    ref = jnp.maximum(ref + b_conv.reshape(1, 3, 1, 1), 0.0)
    assert out.shape == (n, 3, h + 2, w + 2), out.shape
    assert jnp.allclose(out, ref, atol=1e-5), "mismatch vs reference"

    print("KERNEL_OK")
</pallas_src>

<mosaic_0001>
module attributes {stable_mosaic.version = 11 : i64} {
  func.func @kernel(%arg0: i32, %arg1: i32, %arg2: memref<1x3x2x128xf32, #tpu.memory_space<vmem>>, %arg3: memref<9xf32, #tpu.memory_space<smem>>, %arg4: memref<3xf32, #tpu.memory_space<smem>>, %arg5: memref<1x3x2x128xf32, #tpu.memory_space<vmem>>) attributes {dimension_semantics = [#tpu.dimension_semantics<parallel>, #tpu.dimension_semantics<parallel>], iteration_bounds = array<i64: 2, 1>, scalar_prefetch = 0 : i64, scratch_operands = 0 : i64, tpu.core_type = #tpu.core_type<tc>, window_params = [{transform_indices = @transform_0, window_bounds = array<i64: 1, 3, 2, 128>}, {transform_indices = @transform_1, window_bounds = array<i64: 9>}, {transform_indices = @transform_2, window_bounds = array<i64: 3>}, {transform_indices = @transform_3, window_bounds = array<i64: 1, 3, 2, 128>}]} {
    %c0 = arith.constant 0 : index
    %c0_0 = arith.constant 0 : index
    %c0_1 = arith.constant 0 : index
    %c0_2 = arith.constant 0 : index
    %0 = vector.load %arg2[%c0, %c0_0, %c0_1, %c0_2] : memref<1x3x2x128xf32, #tpu.memory_space<vmem>>, vector<1x1x2x128xf32>
    %1 = vector.shape_cast %0 : vector<1x1x2x128xf32> to vector<2x128xf32>
    %c0_3 = arith.constant 0 : index
    %2 = memref.load %arg3[%c0_3] : memref<9xf32, #tpu.memory_space<smem>>
    %3 = vector.broadcast %2 : f32 to vector<2x128xf32>
    %4 = arith.mulf %1, %3 : vector<2x128xf32>
    %c0_4 = arith.constant 0 : index
    %c1 = arith.constant 1 : index
    %c0_5 = arith.constant 0 : index
    %c0_6 = arith.constant 0 : index
    %5 = vector.load %arg2[%c0_4, %c1, %c0_5, %c0_6] : memref<1x3x2x128xf32, #tpu.memory_space<vmem>>, vector<1x1x2x128xf32>
    %6 = vector.shape_cast %5 : vector<1x1x2x128xf32> to vector<2x128xf32>
    %c1_7 = arith.constant 1 : index
    %7 = memref.load %arg3[%c1_7] : memref<9xf32, #tpu.memory_space<smem>>
    %8 = vector.broadcast %7 : f32 to vector<2x128xf32>
    %9 = arith.mulf %6, %8 : vector<2x128xf32>
    %10 = arith.addf %4, %9 : vector<2x128xf32>
    %c0_8 = arith.constant 0 : index
    %c2 = arith.constant 2 : index
    %c0_9 = arith.constant 0 : index
    %c0_10 = arith.constant 0 : index
    %11 = vector.load %arg2[%c0_8, %c2, %c0_9, %c0_10] : memref<1x3x2x128xf32, #tpu.memory_space<vmem>>, vector<1x1x2x128xf32>
    %12 = vector.shape_cast %11 : vector<1x1x2x128xf32> to vector<2x128xf32>
    %c2_11 = arith.constant 2 : index
    %13 = memref.load %arg3[%c2_11] : memref<9xf32, #tpu.memory_space<smem>>
    %14 = vector.broadcast %13 : f32 to vector<2x128xf32>
    %15 = arith.mulf %12, %14 : vector<2x128xf32>
    %16 = arith.addf %10, %15 : vector<2x128xf32>
    %c0_12 = arith.constant 0 : index
    %17 = memref.load %arg4[%c0_12] : memref<3xf32, #tpu.memory_space<smem>>
    %18 = vector.broadcast %17 : f32 to vector<2x128xf32>
    %19 = arith.addf %16, %18 : vector<2x128xf32>
    %cst = arith.constant 0.000000e+00 : f32
    %20 = vector.broadcast %cst : f32 to vector<2x128xf32>
    %21 = arith.maximumf %19, %20 : vector<2x128xf32>
    %c0_13 = arith.constant 0 : index
    %c0_14 = arith.constant 0 : index
    %c0_15 = arith.constant 0 : index
    %c0_16 = arith.constant 0 : index
    %22 = vector.load %arg5[%c0_13, %c0_14, %c0_15, %c0_16] : memref<1x3x2x128xf32, #tpu.memory_space<vmem>>, vector<1x1x2x128xf32>
    %23 = vector.shape_cast %22 : vector<1x1x2x128xf32> to vector<2x128xf32>
    %24 = vector.shape_cast %21 : vector<2x128xf32> to vector<1x1x2x128xf32>
    tpu.vector_store %arg5[%c0_13, %c0_14, %c0_15, %c0_16], %24 {strides = array<i32>} : memref<1x3x2x128xf32, #tpu.memory_space<vmem>>, vector<1x1x2x128xf32>,
    %c0_17 = arith.constant 0 : index
    %c0_18 = arith.constant 0 : index
    %c0_19 = arith.constant 0 : index
    %c0_20 = arith.constant 0 : index
    %25 = vector.load %arg2[%c0_17, %c0_18, %c0_19, %c0_20] : memref<1x3x2x128xf32, #tpu.memory_space<vmem>>, vector<1x1x2x128xf32>
    %26 = vector.shape_cast %25 : vector<1x1x2x128xf32> to vector<2x128xf32>
    %c3 = arith.constant 3 : index
    %27 = memref.load %arg3[%c3] : memref<9xf32, #tpu.memory_space<smem>>
    %28 = vector.broadcast %27 : f32 to vector<2x128xf32>
    %29 = arith.mulf %26, %28 : vector<2x128xf32>
    %c0_21 = arith.constant 0 : index
    %c1_22 = arith.constant 1 : index
    %c0_23 = arith.constant 0 : index
    %c0_24 = arith.constant 0 : index
    %30 = vector.load %arg2[%c0_21, %c1_22, %c0_23, %c0_24] : memref<1x3x2x128xf32, #tpu.memory_space<vmem>>, vector<1x1x2x128xf32>
    %31 = vector.shape_cast %30 : vector<1x1x2x128xf32> to vector<2x128xf32>
    %c4 = arith.constant 4 : index
    %32 = memref.load %arg3[%c4] : memref<9xf32, #tpu.memory_space<smem>>
    %33 = vector.broadcast %32 : f32 to vector<2x128xf32>
    %34 = arith.mulf %31, %33 : vector<2x128xf32>
    %35 = arith.addf %29, %34 : vector<2x128xf32>
    %c0_25 = arith.constant 0 : index
    %c2_26 = arith.constant 2 : index
    %c0_27 = arith.constant 0 : index
    %c0_28 = arith.constant 0 : index
    %36 = vector.load %arg2[%c0_25, %c2_26, %c0_27, %c0_28] : memref<1x3x2x128xf32, #tpu.memory_space<vmem>>, vector<1x1x2x128xf32>
    %37 = vector.shape_cast %36 : vector<1x1x2x128xf32> to vector<2x128xf32>
    %c5 = arith.constant 5 : index
    %38 = memref.load %arg3[%c5] : memref<9xf32, #tpu.memory_space<smem>>
    %39 = vector.broadcast %38 : f32 to vector<2x128xf32>
    %40 = arith.mulf %37, %39 : vector<2x128xf32>
    %41 = arith.addf %35, %40 : vector<2x128xf32>
    %c1_29 = arith.constant 1 : index
    %42 = memref.load %arg4[%c1_29] : memref<3xf32, #tpu.memory_space<smem>>
    %43 = vector.broadcast %42 : f32 to vector<2x128xf32>
    %44 = arith.addf %41, %43 : vector<2x128xf32>
    %cst_30 = arith.constant 0.000000e+00 : f32
    %45 = vector.broadcast %cst_30 : f32 to vector<2x128xf32>
    %46 = arith.maximumf %44, %45 : vector<2x128xf32>
    %c0_31 = arith.constant 0 : index
    %c1_32 = arith.constant 1 : index
    %c0_33 = arith.constant 0 : index
    %c0_34 = arith.constant 0 : index
    %47 = vector.load %arg5[%c0_31, %c1_32, %c0_33, %c0_34] : memref<1x3x2x128xf32, #tpu.memory_space<vmem>>, vector<1x1x2x128xf32>
    %48 = vector.shape_cast %47 : vector<1x1x2x128xf32> to vector<2x128xf32>
    %49 = vector.shape_cast %46 : vector<2x128xf32> to vector<1x1x2x128xf32>
    tpu.vector_store %arg5[%c0_31, %c1_32, %c0_33, %c0_34], %49 {strides = array<i32>} : memref<1x3x2x128xf32, #tpu.memory_space<vmem>>, vector<1x1x2x128xf32>,
    %c0_35 = arith.constant 0 : index
    %c0_36 = arith.constant 0 : index
    %c0_37 = arith.constant 0 : index
    %c0_38 = arith.constant 0 : index
    %50 = vector.load %arg2[%c0_35, %c0_36, %c0_37, %c0_38] : memref<1x3x2x128xf32, #tpu.memory_space<vmem>>, vector<1x1x2x128xf32>
    %51 = vector.shape_cast %50 : vector<1x1x2x128xf32> to vector<2x128xf32>
    %c6 = arith.constant 6 : index
    %52 = memref.load %arg3[%c6] : memref<9xf32, #tpu.memory_space<smem>>
    %53 = vector.broadcast %52 : f32 to vector<2x128xf32>
    %54 = arith.mulf %51, %53 : vector<2x128xf32>
    %c0_39 = arith.constant 0 : index
    %c1_40 = arith.constant 1 : index
    %c0_41 = arith.constant 0 : index
    %c0_42 = arith.constant 0 : index
    %55 = vector.load %arg2[%c0_39, %c1_40, %c0_41, %c0_42] : memref<1x3x2x128xf32, #tpu.memory_space<vmem>>, vector<1x1x2x128xf32>
    %56 = vector.shape_cast %55 : vector<1x1x2x128xf32> to vector<2x128xf32>
    %c7 = arith.constant 7 : index
    %57 = memref.load %arg3[%c7] : memref<9xf32, #tpu.memory_space<smem>>
    %58 = vector.broadcast %57 : f32 to vector<2x128xf32>
    %59 = arith.mulf %56, %58 : vector<2x128xf32>
    %60 = arith.addf %54, %59 : vector<2x128xf32>
    %c0_43 = arith.constant 0 : index
    %c2_44 = arith.constant 2 : index
    %c0_45 = arith.constant 0 : index
    %c0_46 = arith.constant 0 : index
    %61 = vector.load %arg2[%c0_43, %c2_44, %c0_45, %c0_46] : memref<1x3x2x128xf32, #tpu.memory_space<vmem>>, vector<1x1x2x128xf32>
    %62 = vector.shape_cast %61 : vector<1x1x2x128xf32> to vector<2x128xf32>
    %c8 = arith.constant 8 : index
    %63 = memref.load %arg3[%c8] : memref<9xf32, #tpu.memory_space<smem>>
    %64 = vector.broadcast %63 : f32 to vector<2x128xf32>
    %65 = arith.mulf %62, %64 : vector<2x128xf32>
    %66 = arith.addf %60, %65 : vector<2x128xf32>
    %c2_47 = arith.constant 2 : index
    %67 = memref.load %arg4[%c2_47] : memref<3xf32, #tpu.memory_space<smem>>
    %68 = vector.broadcast %67 : f32 to vector<2x128xf32>
    %69 = arith.addf %66, %68 : vector<2x128xf32>
    %cst_48 = arith.constant 0.000000e+00 : f32
    %70 = vector.broadcast %cst_48 : f32 to vector<2x128xf32>
    %71 = arith.maximumf %69, %70 : vector<2x128xf32>
    %c0_49 = arith.constant 0 : index
    %c2_50 = arith.constant 2 : index
    %c0_51 = arith.constant 0 : index
    %c0_52 = arith.constant 0 : index
    %72 = vector.load %arg5[%c0_49, %c2_50, %c0_51, %c0_52] : memref<1x3x2x128xf32, #tpu.memory_space<vmem>>, vector<1x1x2x128xf32>
    %73 = vector.shape_cast %72 : vector<1x1x2x128xf32> to vector<2x128xf32>
    %74 = vector.shape_cast %71 : vector<2x128xf32> to vector<1x1x2x128xf32>
    tpu.vector_store %arg5[%c0_49, %c2_50, %c0_51, %c0_52], %74 {strides = array<i32>} : memref<1x3x2x128xf32, #tpu.memory_space<vmem>>, vector<1x1x2x128xf32>,
    return
  }
  func.func @transform_0(%arg0: i32, %arg1: i32) -> (i32, i32, i32, i32) {
    %c0_i32 = arith.constant 0 : i32
    %c0_i32_0 = arith.constant 0 : i32
    %c0_i32_1 = arith.constant 0 : i32
    return %arg0, %c0_i32, %arg1, %c0_i32_0 : i32, i32, i32, i32
  }
  func.func @transform_1(%arg0: i32, %arg1: i32) -> i32 {
    %c0_i32 = arith.constant 0 : i32
    %c0_i32_0 = arith.constant 0 : i32
    return %c0_i32 : i32
  }
  func.func @transform_2(%arg0: i32, %arg1: i32) -> i32 {
    %c0_i32 = arith.constant 0 : i32
    %c0_i32_0 = arith.constant 0 : i32
    return %c0_i32 : i32
  }
  func.func @transform_3(%arg0: i32, %arg1: i32) -> (i32, i32, i32, i32) {
    %c0_i32 = arith.constant 0 : i32
    %c0_i32_0 = arith.constant 0 : i32
    %c0_i32_1 = arith.constant 0 : i32
    return %arg0, %c0_i32, %arg1, %c0_i32_0 : i32, i32, i32, i32
  }
}

</mosaic_0001>

<llo_original>
// kernel: model_forward.1
$region0: #{model_forward.1}
  #allocation0 [shape = 'u32[]', space=smem, size = 0x4, offset = 0x4, fixed_abs, tag = 'smem constant byte address 0x4 - core index']
  #allocation1 [shape = 'u32[72,128]{1,0:T(1,128)}', space=vmem, size = 0x9000, scoped, tag = 'internal scratch']
  %s0 = inlined_call_operand.vmem [shape: f32[2,3,2,128], index: 0, kind: input, shape index: {}]
  %s1 = inlined_call_operand.vmem [shape: f32[9], index: 1, kind: input, shape index: {}]
  %s2 = inlined_call_operand.vmem [shape: f32[3], index: 2, kind: input, shape index: {}]
  %s3 = inlined_call_operand.vmem [shape: f32[2,3,2,128], index: 3, kind: output, shape index: {}]
  %s4 = sld [smem:[#allocation0]]
  $region53: #{model_forward.1} parent=0
    _
  %s6 = ssub.s32 1, %s4
  %s7 = scalar_select 0, %s6, %s4
  $region1: #{model_forward.1} parent=0
    #allocation2 [shape = 'u8[512]{0}', space=smem, size = 0x200, scoped, tag = 'input window, operand 1, single buffered']
    #allocation3 [shape = 's32[2]{0}', space=sflag, size = 0x8, scoped, tag = 'scoped memory for model_forward.1']
    #allocation4 [shape = 'u8[512]{0}', space=smem, size = 0x200, scoped, tag = 'input window, operand 2, single buffered']
    #allocation5 [shape = 's32[1]{0}', space=sflag, size = 0x4, scoped, tag = 'scoped memory for model_forward.1']
    %8 = vsyncpa [#allocation3], 0
    %9 = vsyncpa [#allocation5], 0
    loop: start=0, step=1, limit=4
    $region2: #{model_forward.1} parent=1 // loop_pre_header
      _
    $region3: #{model_forward.1} parent=1 // loop_header
      %s11 = sphi 0, %s15
      %p12 = scmp.ge.s32.totalorder %s11, 4
      %s18 = sphi 0, %s30
      %s19 = sphi 0, %s26
      %s20 = sphi 0, %s18
      %s21 = sphi 0, %s19
      %s22 = sphi 0, %s20
      %s23 = sphi 0, %s21
      %s35 = sphi 0, %s37
      %s38 = sphi 0, %s35
      %s39 = sphi 0, %s38
      %s55 = sphi 0, %s39
      %s59 = sphi 0, %s59
      %s61 = sphi 0, %s59
      %s62 = sphi 0, %s61
      %s76 = sphi 0, %s62
      %s80 = sphi 0, %s80
      %s82 = sphi 0, %s80
      %s83 = sphi 0, %s82
      %s97 = sphi 0, %s83
      %s105 = sphi 0, %s107
      %s108 = sphi 0, %s105
      %s109 = sphi 0, %s108
      %s125 = sphi 0, %s109
    $region4: #{model_forward.1} parent=1 // loop_header_branch
      %14 = sbr.rel (%p12) target = $region8
    $region5: #{model_forward.1} parent=1 // loop_body
      %s16 = ssub.s32 %s11, 1
      %s17 = ssub.s32 %s11, 2
      %s24 = sadd.s32 1, %s19
      %p25 = scmp.ge.s32.totalorder %s24, 1
      %s26 = scalar_select %p25, 0, %s24
      %s27 = sadd.s32 1, %s18
      %s28 = scalar_select %p25, %s27, %s18
      %p29 = scmp.ge.s32.totalorder %s28, 2
      %s30 = scalar_select %p29, 0, %s28
      %s31 = ssub.s32 %s18, %s30
      %s32 = ssub.s32 %s19, %s26
      %s33 = sor.u32 %s31, %s32
      %p34 = scmp.eq.s32.totalorder %s33, 0
      %s36 = sadd.s32 %s35, 1
      %s37 = scalar_select %p34, %s35, %s36
      %p40 = pneg %p34
      %p41 = scmp.eq.s32.totalorder %s11, 1
      %p42 = por %p40, %p41
      %p43 = scmp.ne.s32.totalorder %s35, %s38
      %p44 = scmp.eq.s32.totalorder %s11, 0
      %p45 = por %p43, %p44
      %p46 = scmp.ne.s32.totalorder %s35, %s38
      %p47 = scmp.eq.s32.totalorder %s16, 1
      %p48 = por %p46, %p47
      %p49 = scmp.ne.s32.totalorder %s38, %s39
      %p50 = scmp.eq.s32.totalorder %s16, 0
      %p51 = por %p49, %p50
      %p52 = scmp.ne.s32.totalorder %s38, %s39
      %p53 = scmp.eq.s32.totalorder %s17, 1
      %p54 = por %p52, %p53
      %p56 = scmp.ne.s32.totalorder %s39, %s55
      %p57 = scmp.eq.s32.totalorder %s17, 0
      %p58 = por %p56, %p57
      %s60 = sadd.s32 %s59, 1
      %p63 = scmp.eq.s32.totalorder %s11, 1
      %p64 = scmp.ne.s32.totalorder %s59, %s61
      %p65 = scmp.eq.s32.totalorder %s11, 0
      %p66 = por %p64, %p65
      %p67 = scmp.ne.s32.totalorder %s59, %s61
      %p68 = scmp.eq.s32.totalorder %s16, 1
      %p69 = por %p67, %p68
      %p70 = scmp.ne.s32.totalorder %s61, %s62
      %p71 = scmp.eq.s32.totalorder %s16, 0
      %p72 = por %p70, %p71
      %p73 = scmp.ne.s32.totalorder %s61, %s62
      %p74 = scmp.eq.s32.totalorder %s17, 1
      %p75 = por %p73, %p74
      %p77 = scmp.ne.s32.totalorder %s62, %s76
      %p78 = scmp.eq.s32.totalorder %s17, 0
      %p79 = por %p77, %p78
      %s81 = sadd.s32 %s80, 1
      %p84 = scmp.eq.s32.totalorder %s11, 1
      %p85 = scmp.ne.s32.totalorder %s80, %s82
      %p86 = scmp.eq.s32.totalorder %s11, 0
      %p87 = por %p85, %p86
      %p88 = scmp.ne.s32.totalorder %s80, %s82
      %p89 = scmp.eq.s32.totalorder %s16, 1
      %p90 = por %p88, %p89
      %p91 = scmp.ne.s32.totalorder %s82, %s83
      %p92 = scmp.eq.s32.totalorder %s16, 0
      %p93 = por %p91, %p92
      %p94 = scmp.ne.s32.totalorder %s82, %s83
      %p95 = scmp.eq.s32.totalorder %s17, 1
      %p96 = por %p94, %p95
      %p98 = scmp.ne.s32.totalorder %s83, %s97
      %p99 = scmp.eq.s32.totalorder %s17, 0
      %p100 = por %p98, %p99
      %s101 = ssub.s32 %s18, %s30
      %s102 = ssub.s32 %s19, %s26
      %s103 = sor.u32 %s101, %s102
      %p104 = scmp.eq.s32.totalorder %s103, 0
      %s106 = sadd.s32 %s105, 1
      %s107 = scalar_select %p104, %s105, %s106
      %p110 = pneg %p104
      %p111 = scmp.eq.s32.totalorder %s11, 1
      %p112 = por %p110, %p111
      %p113 = scmp.ne.s32.totalorder %s105, %s108
      %p114 = scmp.eq.s32.totalorder %s11, 0
      %p115 = por %p113, %p114
      %p116 = scmp.ne.s32.totalorder %s105, %s108
      %p117 = scmp.eq.s32.totalorder %s16, 1
      %p118 = por %p116, %p117
      %p119 = scmp.ne.s32.totalorder %s108, %s109
      %p120 = scmp.eq.s32.totalorder %s16, 0
      %p121 = por %p119, %p120
      %p122 = scmp.ne.s32.totalorder %s108, %s109
      %p123 = scmp.eq.s32.totalorder %s17, 1
      %p124 = por %p122, %p123
      %p126 = scmp.ne.s32.totalorder %s109, %s125
      %p127 = scmp.eq.s32.totalorder %s17, 0
      %p128 = por %p126, %p127
      %p129 = scmp.le.s32.totalorder 1, %s11
      %p130 = scmp.lt.s32.totalorder %s11, 3
      %p131 = pnand %p129, %p130
      %p132 = pneg %p131
      // Predicated region
      $region9: #{model_forward.1} parent=5 // pred_check
        _
      $region10: #{model_forward.1} parent=5 // pred_check_branch
        %134 = sbr.rel (%p131) target = $region12
      $region11: #{model_forward.1} parent=5 // pred_region
        %s135 = ssub.s32 %s11, 1
        // Predicated region
        $region13: #{model_forward.1} parent=11 // pred_check
          %p136 = pneg %p72
        $region14: #{model_forward.1} parent=11 // pred_check_branch
          %138 = sbr.rel (%p136) target = $region16
        $region15: #{model_forward.1} parent=11 // pred_region
          %140 = vsyncadd [#allocation3], 0
          %s142 = sshll.u32 %s1, 4
          %s143 = int_to_ptr.vmem [resolvable:$true] %s142
          %145 = dma.vmem_to_smem %s143, 16, [#allocation2], [#allocation3]
        $region16: #{model_forward.1} parent=11 // pred_fallthru
          _
        // Predicated region
        $region17: #{model_forward.1} parent=11 // pred_check
          %p146 = pneg %p93
        $region18: #{model_forward.1} parent=11 // pred_check_branch
          %148 = sbr.rel (%p146) target = $region20
        $region19: #{model_forward.1} parent=11 // pred_region
          %150 = vsyncadd [#allocation5], 0
          %s152 = sshll.u32 %s2, 4
          %s153 = int_to_ptr.vmem [resolvable:$true] %s152
          %155 = dma.vmem_to_smem %s153, 16, [#allocation4], [#allocation5]
        $region20: #{model_forward.1} parent=11 // pred_fallthru
          _
      $region12: #{model_forward.1} parent=5 // pred_fallthru
        _
      %p156 = scmp.lt.s32.totalorder %s11, 2
      // Predicated region
      $region21: #{model_forward.1} parent=5 // pred_check
        %p157 = pneg %p156
      $region22: #{model_forward.1} parent=5 // pred_check_branch
        %159 = sbr.rel (%p157) target = $region24
      $region23: #{model_forward.1} parent=5 // pred_region
        // Predicated region
        $region25: #{model_forward.1} parent=23 // pred_check
          %p160 = pneg %p45
        $region26: #{model_forward.1} parent=23 // pred_check_branch
          %162 = sbr.rel (%p160) target = $region28
        $region27: #{model_forward.1} parent=23 // pred_region
          %p163 = scmp.lt.s32.totalorder %s18, 1
          %s164 = scalar_select %p163, %s18, 1
          %p165 = scmp.lt.s32.totalorder %s19, 0
          %s166 = scalar_select %p165, %s19, 0
          %s167 = smul.addr %s164, 3
          %s168 = sadd.s32 %s166, %s167
          %s169 = smul.addr %s168, 2
          %s170 = scalar_lea.vmem %s0, %s169
        $region28: #{model_forward.1} parent=23 // pred_fallthru
          _
      $region24: #{model_forward.1} parent=5 // pred_fallthru
        _
      %p171 = scmp.le.s32.totalorder 1, %s11
      %p172 = scmp.lt.s32.totalorder %s11, 3
      %p173 = pnand %p171, %p172
      %p174 = pneg %p173
      // Predicated region
      $region29: #{model_forward.1} parent=5 // pred_check
        _
      $region30: #{model_forward.1} parent=5 // pred_check_branch
        %176 = sbr.rel (%p173) target = $region32
      $region31: #{model_forward.1} parent=5 // pred_region
        %s177 = ssub.s32 %s11, 1
        // Predicated region
        $region33: #{model_forward.1} parent=31 // pred_check
          %p178 = pneg %p72
        $region34: #{model_forward.1} parent=31 // pred_check_branch
          %180 = sbr.rel (%p178) target = $region36
        $region35: #{model_forward.1} parent=31 // pred_region
          %182 = dma.done [#allocation3], 16
        $region36: #{model_forward.1} parent=31 // pred_fallthru
          _
        // Predicated region
        $region37: #{model_forward.1} parent=31 // pred_check
          %p183 = pneg %p93
        $region38: #{model_forward.1} parent=31 // pred_check_branch
          %185 = sbr.rel (%p183) target = $region40
        $region39: #{model_forward.1} parent=31 // pred_region
          %187 = dma.done [#allocation5], 16
        $region40: #{model_forward.1} parent=31 // pred_fallthru
          _
        %188 = sfence
        %p189 = scmp.lt.s32.totalorder %s20, 1
        %s190 = scalar_select %p189, %s20, 1
        %p191 = scmp.lt.s32.totalorder %s21, 0
        %s192 = scalar_select %p191, %s21, 0
        %s193 = smul.addr %s190, 3
        %s194 = sadd.s32 %s192, %s193
        %s195 = smul.addr %s194, 2
        %s196 = scalar_lea.vmem %s0, %s195
        %p197 = pneg %p51
        %p198 = pneg %p48
        %p199 = pneg %p72
        %p200 = pneg %p69
        %p201 = pneg %p93
        %p202 = pneg %p90
        %p203 = pneg %p121
        %p204 = pneg %p118
        %p205 = scmp.lt.s32.totalorder %s20, 1
        %s206 = scalar_select %p205, %s20, 1
        %p207 = scmp.lt.s32.totalorder %s21, 0
        %s208 = scalar_select %p207, %s21, 0
        %s209 = smul.addr %s206, 3
        %s210 = sadd.s32 %s208, %s209
        %s211 = smul.addr %s210, 2
        %s212 = scalar_lea.vmem %s3, %s211
        %p213 = scmp.lt.s32.totalorder %s20, 1
        %s214 = scalar_select %p213, %s20, 1
        %p215 = scmp.lt.s32.totalorder %s21, 0
        %s216 = scalar_select %p215, %s21, 0
        %s217 = smul.addr %s214, 3
        %s218 = sadd.s32 %s216, %s217
        %s219 = smul.addr %s218, 2
        %s220 = scalar_lea.vmem %s0, %s219
        %p221 = scmp.lt.s32.totalorder %s20, 1
        %s222 = scalar_select %p221, %s20, 1
        %p223 = scmp.lt.s32.totalorder %s21, 0
        %s224 = scalar_select %p223, %s21, 0
        %s225 = smul.addr %s222, 3
        %s226 = sadd.s32 %s224, %s225
        %s227 = smul.addr %s226, 2
        %s228 = scalar_lea.vmem %s3, %s227
        %v229 = vld [vmem:[%s220] sm:$0x3]
        %s230 = sld [smem:[#allocation2]]
        %v231 = vstv %s230
        %v232 = vmul.f32 %v229, %v231
        %s233 = scalar_lea.vmem %s220, 2
        %v234 = vld [vmem:[%s233] sm:$0x3]
        %s235 = sld [smem:[#allocation2 + $0x1]]
        %v236 = vstv %s235
        %v237 = vmul.f32 %v234, %v236
        %v238 = vadd.f32 %v232, %v237
        %s239 = scalar_lea.vmem %s220, 4
        %v240 = vld [vmem:[%s239] sm:$0x3]
        %s241 = sld [smem:[#allocation2 + $0x2]]
        %v242 = vstv %s241
        %v243 = vmul.f32 %v240, %v242
        %v244 = vadd.f32 %v238, %v243
        %s245 = sld [smem:[#allocation4]]
        %v246 = vstv %s245
        %v247 = vadd.f32 %v244, %v246
        %v248 = vmax.f32 %v247, 0.0
        %249 = vst [vmem:[%s228] sm:$0x3] %v248
        %v250 = vld [vmem:[%s220] sm:$0x3]
        %s251 = sld [smem:[#allocation2 + $0x3]]
        %v252 = vstv %s251
        %v253 = vmul.f32 %v250, %v252
        %v254 = vld [vmem:[%s233] sm:$0x3]
        %s255 = sld [smem:[#allocation2 + $0x4]]
        %v256 = vstv %s255
        %v257 = vmul.f32 %v254, %v256
        %v258 = vadd.f32 %v253, %v257
        %v259 = vld [vmem:[%s239] sm:$0x3]
        %s260 = sld [smem:[#allocation2 + $0x5]]
        %v261 = vstv %s260
        %v262 = vmul.f32 %v259, %v261
        %v263 = vadd.f32 %v258, %v262
        %s264 = sld [smem:[#allocation4 + $0x1]]
        %v265 = vstv %s264
        %v266 = vadd.f32 %v263, %v265
        %v267 = vmax.f32 %v266, 0.0
        %s268 = scalar_lea.vmem %s228, 2
        %269 = vst [vmem:[%s268] sm:$0x3] %v267
        %v270 = vld [vmem:[%s220] sm:$0x3]
        %s271 = sld [smem:[#allocation2 + $0x6]]
        %v272 = vstv %s271
        %v273 = vmul.f32 %v270, %v272
        %v274 = vld [vmem:[%s233] sm:$0x3]
        %s275 = sld [smem:[#allocation2 + $0x7]]
        %v276 = vstv %s275
        %v277 = vmul.f32 %v274, %v276
        %v278 = vadd.f32 %v273, %v277
        %v279 = vld [vmem:[%s239] sm:$0x3]
        %s280 = sld [smem:[#allocation2 + $0x8]]
        %v281 = vstv %s280
        %v282 = vmul.f32 %v279, %v281
        %v283 = vadd.f32 %v278, %v282
        %s284 = sld [smem:[#allocation4 + $0x2]]
        %v285 = vstv %s284
        %v286 = vadd.f32 %v283, %v285
        %v287 = vmax.f32 %v286, 0.0
        %s288 = scalar_lea.vmem %s228, 4
        %289 = vst [vmem:[%s288] sm:$0x3] %v287
        %p290 = scmp.lt.s32.totalorder %s20, 1
        %s291 = scalar_select %p290, %s20, 1
        %p292 = scmp.lt.s32.totalorder %s21, 0
        %s293 = scalar_select %p292, %s21, 0
        %s294 = smul.addr %s291, 3
        %s295 = sadd.s32 %s293, %s294
        %s296 = smul.addr %s295, 2
        %s297 = scalar_lea.vmem %s3, %s296
        // Predicated region
        $region41: #{model_forward.1} parent=31 // pred_check
          %p298 = pneg %p118
        $region42: #{model_forward.1} parent=31 // pred_check_branch
          %300 = sbr.rel (%p298) target = $region44
        $region43: #{model_forward.1} parent=31 // pred_region
          _
        $region44: #{model_forward.1} parent=31 // pred_fallthru
          _
      $region32: #{model_forward.1} parent=5 // pred_fallthru
        _
      %p301 = scmp.le.s32.totalorder 2, %s11
      // Predicated region
      $region45: #{model_forward.1} parent=5 // pred_check
        %p302 = pneg %p301
      $region46: #{model_forward.1} parent=5 // pred_check_branch
        %304 = sbr.rel (%p302) target = $region48
      $region47: #{model_forward.1} parent=5 // pred_region
        %s305 = ssub.s32 %s11, 2
        // Predicated region
        $region49: #{model_forward.1} parent=47 // pred_check
          %p306 = pneg %p124
        $region50: #{model_forward.1} parent=47 // pred_check_branch
          %308 = sbr.rel (%p306) target = $region52
        $region51: #{model_forward.1} parent=47 // pred_region
          %p309 = scmp.lt.s32.totalorder %s22, 1
          %s310 = scalar_select %p309, %s22, 1
          %p311 = scmp.lt.s32.totalorder %s23, 0
          %s312 = scalar_select %p311, %s23, 0
          %s313 = smul.addr %s310, 3
          %s314 = sadd.s32 %s312, %s313
          %s315 = smul.addr %s314, 2
          %s316 = scalar_lea.vmem %s3, %s315
        $region52: #{model_forward.1} parent=47 // pred_fallthru
          _
      $region48: #{model_forward.1} parent=5 // pred_fallthru
        _
    $region6: #{model_forward.1} parent=1 // loop_footer
      %s15 = sadd.s32 1, %s11
    $region7: #{model_forward.1} parent=1 // loop_footer_branch
      %10 = sbr.rel target = $region3
    $region8: #{model_forward.1} parent=1 // loop_exit
      _
    %317 = vsyncpa [#allocation3], 1
    %s318 = scalar_lea.sflag [#allocation3], 1
    %319 = vsyncpa %s318, 1
    %320 = vsyncpa [#allocation5], 1

</llo_original>
